<compile_context>
chip_gen: v7x
topology: tpu7x:2x2x1
jax: 0.10.0
libtpu: 0.0.40
codegen_flags: <defaults>
</compile_context>

<pallas_src>
import functools

import jax
import jax.numpy as jnp
from jax.experimental import pallas as pl
from jax.experimental.pallas import tpu as pltpu

# Target size of one output block. ~2 MiB keeps the double-buffered VMEM
# footprint at ~4-5 MiB (fits every generation's scoped-VMEM default without
# needing vmem_limit_bytes) while sitting on the flat part of the measured
# tile-size vs. bandwidth curve.
_TARGET_BLOCK_BYTES = 2 * 1024 * 1024


def _numerical_embedder_kernel(x_ref, expand_ref, wb_ref, o_ref):
    # x_ref:      (TB, N)     f32  scalar feature values for this batch tile
    # expand_ref: (N, N*D)    f32  one-hot expansion, expand[n, n*D + d] = 1
    # wb_ref:     (2, N*D)    f32  row 0 = flat weights, row 1 = flat biases
    # o_ref:      (TB, N*D)        lane-dense output slab
    #
    # Broadcast x[t, n] across lanes n*D .. n*D+D-1 via the one-hot matmul
    # (MXU).  Row t of the result depends only on row t of x, so padded /
    # partial batch tiles are harmless.
    x_bc = jnp.dot(x_ref[...], expand_ref[...],
                   preferred_element_type=jnp.float32)          # (TB, N*D)
    wb = wb_ref[...]                                            # (2, N*D)
    out = x_bc * wb[0:1, :] + wb[1:2, :]                        # f32 FMA
    o_ref[...] = out.astype(o_ref.dtype)                        # dense 128-lane stores


@functools.partial(jax.jit, static_argnames=("out_dtype",))
def numerical_embedder(x, weights, biases, *, out_dtype=None):
    """x: (B, N), weights/biases: (N, D). Returns (B, N, D) = x[..., None] * w + b."""
    B, N = x.shape
    Nw, D = weights.shape
    assert Nw == N and biases.shape == (N, D)
    ND = N * D
    if out_dtype is None:
        out_dtype = jnp.result_type(x.dtype, weights.dtype, biases.dtype)

    # Promote to f32 for the FMA; cast down only at the store inside the kernel.
    x_f32 = x.astype(jnp.float32)                                    # (B, N)
    wb = jnp.stack([weights, biases]).astype(jnp.float32).reshape(2, ND)
    # One-hot expansion kron(I_N, ones(1, D)).  Depends only on shapes, so XLA
    # constant-folds it; it is DMA'd once and stays VMEM-resident.
    expand = jnp.repeat(jnp.eye(N, dtype=jnp.float32), D, axis=1)    # (N, N*D)

    # ---- batch tile ------------------------------------------------------
    out_row_bytes = ND * jnp.dtype(out_dtype).itemsize
    tb = min(B, max(1, _TARGET_BLOCK_BYTES // out_row_bytes))
    if B >= 16:
        # Keep >= 2 grid steps (so the "parallel" axis shards across v7x's two
        # TensorCores) and keep batch tiles a multiple of 8 sublanes.
        tb = min(tb, pl.cdiv(B, 2))
        tb = max(8, (tb // 8) * 8)
    grid_b = pl.cdiv(B, tb)

    out_flat = pl.pallas_call(
        _numerical_embedder_kernel,
        grid=(grid_b,),
        in_specs=[
            pl.BlockSpec((tb, N), lambda i: (i, 0)),    # x: dense 2-D batch tiles
            pl.BlockSpec((N, ND), lambda i: (0, 0)),    # expansion: VMEM-resident
            pl.BlockSpec((2, ND), lambda i: (0, 0)),    # fused weights+biases: resident
        ],
        out_specs=pl.BlockSpec((tb, ND), lambda i: (i, 0)),
        out_shape=jax.ShapeDtypeStruct((B, ND), out_dtype),
        compiler_params=pltpu.CompilerParams(
            dimension_semantics=("parallel",),          # batch tiles are independent
        ),
    )(x_f32, expand, wb)

    # Free row-major reshape back to the module's (B, N, D) layout.
    return out_flat.reshape(B, N, D)


if __name__ == "__main__":
    # Small shapes consistent with the module: batch=2, num_numerical_types=8, dim=32.
    B, N, D = 2, 8, 32

    key = jax.random.PRNGKey(0)
    kx, kw, kb = jax.random.split(key, 3)
    x = jax.random.normal(kx, (B, N), jnp.float32)
    weights = jax.random.normal(kw, (N, D), jnp.float32)
    biases = jax.random.normal(kb, (N, D), jnp.float32)

    out = numerical_embedder(x, weights, biases)
    out = jax.block_until_ready(out)

    # Pure-JAX reference: rearrange(x, 'b n -> b n 1') * weights + biases
    ref = x[:, :, None] * weights[None] + biases[None]

    assert out.shape == (B, N, D)
    assert out.dtype == ref.dtype
    assert bool(jnp.all(jnp.isfinite(out)))
    assert jnp.allclose(out, ref, atol=1e-5, rtol=1e-5)
    print("KERNEL_OK")
</pallas_src>

<mosaic_0001>
module attributes {stable_mosaic.version = 11 : i64} {
  func.func @_numerical_embedder_kernel(%arg0: i32, %arg1: memref<2x8xf32, #tpu.memory_space<vmem>>, %arg2: memref<8x256xf32, #tpu.memory_space<vmem>>, %arg3: memref<2x256xf32, #tpu.memory_space<vmem>>, %arg4: memref<2x256xf32, #tpu.memory_space<vmem>>) attributes {dimension_semantics = [#tpu.dimension_semantics<parallel>], iteration_bounds = array<i64: 1>, scalar_prefetch = 0 : i64, scratch_operands = 0 : i64, tpu.core_type = #tpu.core_type<tc>, window_params = [{transform_indices = @transform_0, window_bounds = array<i64: 2, 8>}, {pipeline_mode = #tpu.pipeline_mode<synchronous>, transform_indices = @transform_1, window_bounds = array<i64: 8, 256>}, {pipeline_mode = #tpu.pipeline_mode<synchronous>, transform_indices = @transform_2, window_bounds = array<i64: 2, 256>}, {transform_indices = @transform_3, window_bounds = array<i64: 2, 256>}]} {
    %c0 = arith.constant 0 : index
    %c0_0 = arith.constant 0 : index
    %0 = vector.load %arg1[%c0, %c0_0] : memref<2x8xf32, #tpu.memory_space<vmem>>, vector<2x8xf32>
    %c0_1 = arith.constant 0 : index
    %c0_2 = arith.constant 0 : index
    %1 = vector.load %arg2[%c0_1, %c0_2] : memref<8x256xf32, #tpu.memory_space<vmem>>, vector<8x256xf32>
    %cst = arith.constant dense<0.000000e+00> : vector<2x256xf32>
    %2 = tpu.matmul %0, %1, %cst {dimension_numbers = #tpu.dot_dimension_numbers<[1], [0], [0], [1], [0, 0, 1, 1], [], []>} : vector<2x8xf32>, vector<8x256xf32>, vector<2x256xf32> -> vector<2x256xf32>
    %c0_3 = arith.constant 0 : index
    %c0_4 = arith.constant 0 : index
    %3 = vector.load %arg3[%c0_3, %c0_4] : memref<2x256xf32, #tpu.memory_space<vmem>>, vector<2x256xf32>
    %4 = vector.extract_strided_slice %3 {offsets = [0, 0], sizes = [1, 256], strides = [1, 1]} : vector<2x256xf32> to vector<1x256xf32>
    %5 = vector.broadcast %4 : vector<1x256xf32> to vector<2x256xf32>
    %6 = arith.mulf %2, %5 : vector<2x256xf32>
    %7 = vector.extract_strided_slice %3 {offsets = [1, 0], sizes = [1, 256], strides = [1, 1]} : vector<2x256xf32> to vector<1x256xf32>
    %8 = vector.broadcast %7 : vector<1x256xf32> to vector<2x256xf32>
    %9 = arith.addf %6, %8 : vector<2x256xf32>
    %c0_5 = arith.constant 0 : index
    %c0_6 = arith.constant 0 : index
    %10 = vector.load %arg4[%c0_5, %c0_6] : memref<2x256xf32, #tpu.memory_space<vmem>>, vector<2x256xf32>
    tpu.vector_store %arg4[%c0_5, %c0_6], %9 {strides = array<i32>} : memref<2x256xf32, #tpu.memory_space<vmem>>, vector<2x256xf32>,
    return
  }
  func.func @transform_0(%arg0: i32) -> (i32, i32) {
    %c0_i32 = arith.constant 0 : i32
    %c0_i32_0 = arith.constant 0 : i32
    return %arg0, %c0_i32 : i32, i32
  }
  func.func @transform_1(%arg0: i32) -> (i32, i32) {
    %c0_i32 = arith.constant 0 : i32
    %c0_i32_0 = arith.constant 0 : i32
    %c0_i32_1 = arith.constant 0 : i32
    return %c0_i32, %c0_i32_0 : i32, i32
  }
  func.func @transform_2(%arg0: i32) -> (i32, i32) {
    %c0_i32 = arith.constant 0 : i32
    %c0_i32_0 = arith.constant 0 : i32
    %c0_i32_1 = arith.constant 0 : i32
    return %c0_i32, %c0_i32_0 : i32, i32
  }
  func.func @transform_3(%arg0: i32) -> (i32, i32) {
    %c0_i32 = arith.constant 0 : i32
    %c0_i32_0 = arith.constant 0 : i32
    return %arg0, %c0_i32 : i32, i32
  }
}

</mosaic_0001>

<llo_original>
// kernel: numerical_embedder.1
$region0: #{numerical_embedder.1}
  #allocation0 [shape = 'u32[]', space=smem, size = 0x4, offset = 0x4, fixed_abs, tag = 'smem constant byte address 0x4 - core index']
  #allocation1 [shape = 'u32[144,128]{1,0:T(1,128)}', space=vmem, size = 0x12000, scoped, tag = 'internal scratch']
  %s0 = inlined_call_operand.vmem [shape: f32[2,8], index: 0, kind: input, shape index: {}]
  %s1 = inlined_call_operand.vmem [shape: f32[8,256], index: 1, kind: input, shape index: {}]
  %s2 = inlined_call_operand.vmem [shape: f32[2,256], index: 2, kind: input, shape index: {}]
  %s3 = inlined_call_operand.vmem [shape: f32[2,256], index: 3, kind: output, shape index: {}]
  %s4 = sld [smem:[#allocation0]]
  $region22: #{numerical_embedder.1} parent=0
    _
  %s6 = ssub.s32 1, %s4
  %s7 = scalar_select 0, %s6, %s4
  // Predicated region
  $region2: #{numerical_embedder.1} parent=0 // pred_check
    _
  $region3: #{numerical_embedder.1} parent=0 // pred_check_branch
    %9 = sbr.rel (0) target = $region5
  $region4: #{numerical_embedder.1} parent=0 // pred_region
    _
  $region5: #{numerical_embedder.1} parent=0 // pred_fallthru
    _
  // Predicated region
  $region6: #{numerical_embedder.1} parent=0 // pred_check
    _
  $region7: #{numerical_embedder.1} parent=0 // pred_check_branch
    %11 = sbr.rel (0) target = $region9
  $region8: #{numerical_embedder.1} parent=0 // pred_region
    _
  $region9: #{numerical_embedder.1} parent=0 // pred_fallthru
    _
  // Predicated region
  $region10: #{numerical_embedder.1} parent=0 // pred_check
    _
  $region11: #{numerical_embedder.1} parent=0 // pred_check_branch
    %13 = sbr.rel (0) target = $region13
  $region12: #{numerical_embedder.1} parent=0 // pred_region
    _
  $region13: #{numerical_embedder.1} parent=0 // pred_fallthru
    _
  %v14 = vld [vmem:[%s0] sm:$0x3]
  %v15 = vld [vmem:[%s1] sm:$0xff]
  %v16 = vld [vmem:[%s1 + $0x8] sm:$0xff]
  %vm17 = vcmask 64512
  %v19 = vsel %vm17, %v14, 0
  %21 = vmatprep.subr.mxu0 %v16
  %22 = vmatpush1.msra.mxu0 %v15
  %23 = vmatprep.subr.mxu0 0.0
  %24 = vmatpush1.msra.mxu0 0.0
  %25 = vmatprep.subr.mxu0 0.0
  %26 = vmatpush1.msra.mxu0 0.0
  %27 = vmatprep.subr.mxu0 0.0
  %28 = vmatpush1.msra.mxu0 0.0
  %29 = vmatprep.subr.mxu0 0.0
  %30 = vmatpush1.msra.mxu0 0.0
  %31 = vmatprep.subr.mxu0 0.0
  %32 = vmatpush1.msra.mxu0 0.0
  %33 = vmatprep.subr.mxu0 0.0
  %34 = vmatpush1.msra.mxu0 0.0
  %35 = vmatprep.subr.mxu0 0.0
  %36 = vmatpush1.msra.mxu0 0.0
  %37 = vmatprep.subr.mxu0 0.0
  %38 = vmatpush1.msra.mxu0 0.0
  %39 = vmatprep.subr.mxu0 0.0
  %40 = vmatpush1.msra.mxu0 0.0
  %41 = vmatprep.subr.mxu0 0.0
  %42 = vmatpush1.msra.mxu0 0.0
  %43 = vmatprep.subr.mxu0 0.0
  %44 = vmatpush1.msra.mxu0 0.0
  %45 = vmatprep.subr.mxu0 0.0
  %46 = vmatpush1.msra.mxu0 0.0
  %47 = vmatprep.subr.mxu0 0.0
  %48 = vmatpush1.msra.mxu0 0.0
  %49 = vmatprep.subr.mxu0 0.0
  %50 = vmatpush1.msra.mxu0 0.0
  %51 = vmatprep.subr.mxu0 0.0
  %52 = vmatpush1.msra.mxu0 0.0
  %53 = vmatprep.subr.mxu0 0.0
  %54 = vmatpush1.msra.mxu0 0.0
  %55 = vmatprep.subr.mxu0 0.0
  %56 = vmatpush1.msra.mxu0 0.0
  %57 = vmatprep.subr.mxu0 0.0
  %58 = vmatpush1.msra.mxu0 0.0
  %59 = vmatprep.subr.mxu0 0.0
  %60 = vmatpush1.msra.mxu0 0.0
  %61 = vmatprep.subr.mxu0 0.0
  %62 = vmatpush1.msra.mxu0 0.0
  %63 = vmatprep.subr.mxu0 0.0
  %64 = vmatpush1.msra.mxu0 0.0
  %65 = vmatprep.subr.mxu0 0.0
  %66 = vmatpush1.msra.mxu0 0.0
  %67 = vmatprep.subr.mxu0 0.0
  %68 = vmatpush1.msra.mxu0 0.0
  %69 = vmatprep.subr.mxu0 0.0
  %70 = vmatpush1.msra.mxu0 0.0
  %71 = vmatprep.subr.mxu0 0.0
  %72 = vmatpush1.msra.mxu0 0.0
  %73 = vmatprep.subr.mxu0 0.0
  %74 = vmatpush1.msra.mxu0 0.0
  %75 = vmatprep.subr.mxu0 0.0
  %76 = vmatpush1.msra.mxu0 0.0
  %77 = vmatprep.subr.mxu0 0.0
  %78 = vmatpush1.msra.mxu0 0.0
  %79 = vmatprep.subr.mxu0 0.0
  %80 = vmatpush1.msra.mxu0 0.0
  %81 = vmatprep.subr.mxu0 0.0
  %82 = vmatpush1.msra.mxu0 0.0
  %83 = vmatprep.subr.mxu0 0.0
  %84 = vmatpush1.msra.mxu0 0.0
  %85 = vmatprep.mubr.f32.mxu0 0.0
  %86 = vmatmul.mubr.f32.gmra.mrb[0].mxu0 %v19
  %v87 = vpop.f32.mrb[0].mxu0
  %v88 = vadd.f32 0.0, %v87
  %v89 = vpop.f32.mrb[0].mxu0
  %v90 = vadd.f32 0.0, %v89
  %91 = vdwg.mxu0
  %v92 = vld [vmem:[%s2] sm:$0xf]
  %v94 = vlaneseq
  %v95 = vshrl.u32 %v94, 7
  %v96 = vsub.s32 0, %v95
  %v97 = vrot.slane %v92, %v96
  %v98 = vlaneseq
  %v99 = vshrl.u32 %v98, 7
  %v100 = vsub.s32 2, %v99
  %v101 = vrot.slane %v92, %v100
  %v104 = vlaneseq
  %v105 = vshrl.u32 %v104, 7
  %v106 = vsub.s32 0, %v105
  %v107 = vrot.slane %v97, %v106
  %v108 = vlaneseq
  %v109 = vshrl.u32 %v108, 7
  %v110 = vsub.s32 0, %v109
  %v111 = vrot.slane %v101, %v110
  %v112 = vmul.f32 %v88, %v107
  %v113 = vmul.f32 %v90, %v111
  %v114 = vlaneseq
  %v115 = vshrl.u32 %v114, 7
  %v116 = vsub.s32 1, %v115
  %v117 = vrot.slane %v92, %v116
  %v118 = vlaneseq
  %v119 = vshrl.u32 %v118, 7
  %v120 = vsub.s32 3, %v119
  %v121 = vrot.slane %v92, %v120
  %v124 = vlaneseq
  %v125 = vshrl.u32 %v124, 7
  %v126 = vsub.s32 1, %v125
  %v127 = vrot.slane %v117, %v126
  %v128 = vlaneseq
  %v129 = vshrl.u32 %v128, 7
  %v130 = vsub.s32 1, %v129
  %v131 = vrot.slane %v121, %v130
  %v132 = vadd.f32 %v112, %v127
  %v133 = vadd.f32 %v113, %v131
  %v136 = vcombine.low %v132, %v133
  %v138 = vunpack.c.l.s4 1983009808
  %v139 = vunpack.c.0.s8 %v138
  %v140 = vlaneseq
  %v141 = vshrl.u32 %v140, 7
  %v142 = vsub.s32 %v139, %v141
  %v143 = vrot.slane %v136, %v142
  %145 = vst [vmem:[%s3] sm:$0xf] %v143
  // Predicated region
  $region14: #{numerical_embedder.1} parent=0 // pred_check
    _
  $region15: #{numerical_embedder.1} parent=0 // pred_check_branch
    %147 = sbr.rel (0) target = $region17
  $region16: #{numerical_embedder.1} parent=0 // pred_region
    _
  $region17: #{numerical_embedder.1} parent=0 // pred_fallthru
    _
  // Predicated region
  $region18: #{numerical_embedder.1} parent=0 // pred_check
    _
  $region19: #{numerical_embedder.1} parent=0 // pred_check_branch
    %149 = sbr.rel (0) target = $region21
  $region20: #{numerical_embedder.1} parent=0 // pred_region
    _
  $region21: #{numerical_embedder.1} parent=0 // pred_fallthru
    _

</llo_original>
